<compile_context>
chip_gen: v7x
topology: tpu7x:2x2x1
jax: 0.10.0
libtpu: 0.0.40
codegen_flags: <defaults>
</compile_context>

<pallas_src>
import functools

import numpy as np
import jax
import jax.numpy as jnp
from jax.experimental import pallas as pl
from jax.experimental.pallas import tpu as pltpu


def _matcher_kernel(bounds_ref, mask_ref, *, len_feature: int, num_queries: int):
    """bounds_ref: (4*B,) int32 SMEM, flattened rows of (Xmin, Ymin, Xmax, Ymax).
       mask_ref  : (1, B*NQ) int8 VMEM membership mask (lane-dense)."""
    nq = num_queries
    bs = mask_ref.shape[1] // nq

    # Query-id -> (row, col) on the L x L feature grid; no integer divide when L = 2^k.
    q = jax.lax.broadcasted_iota(jnp.int32, (1, nq), 1)
    if len_feature & (len_feature - 1) == 0:            # power of two
        shift = len_feature.bit_length() - 1
        row = q >> shift
        col = q & (len_feature - 1)
    else:
        row = q // len_feature
        col = q - row * len_feature

    # TODO(synk): for large B (video batches) replace this unrolled loop with a single
    # broadcast compare row(1,NQ) vs per-batch (B,1) VMEM bound columns, and add a
    # parallel grid axis over B (dimension_semantics=("parallel",)) for v7x's 2 TCs.
    for b in range(bs):                                  # B is small and static
        xmin = bounds_ref[4 * b + 0]                     # SMEM scalar reads
        ymin = bounds_ref[4 * b + 1]
        xmax = bounds_ref[4 * b + 2]
        ymax = bounds_ref[4 * b + 3]
        # b[Ymin:Ymax, Xmin:Xmax] membership. Assumes non-negative bounds (normal SOT case).
        # TODO(synk): Python negative-index slicing wraparound is not reproduced for
        # malformed boxes with negative coordinates.
        inside = (row >= ymin) & (row < ymax) & (col >= xmin) & (col < xmax)
        # Static lane slice -> full-width lane-dense int8 store, no int32 intermediate.
        mask_ref[:, b * nq:(b + 1) * nq] = inside.astype(jnp.int8)


@functools.partial(jax.jit, static_argnums=(1,))
def tracking_matcher_mask(bounds_flat: jax.Array, num_queries: int) -> jax.Array:
    """Dense [B, NQ] int8 mask of matched queries (Pallas kernel).

    `bounds_flat` is a (4*B,) int32 array of flattened (Xmin, Ymin, Xmax, Ymax) rows,
    already ceil'd and fixed up for degenerate boxes.
    """
    bs = bounds_flat.shape[0] // 4
    len_feature = int(np.sqrt(num_queries))
    assert len_feature * len_feature == num_queries, "num_queries must be a square"

    kernel = functools.partial(
        _matcher_kernel, len_feature=len_feature, num_queries=num_queries
    )

    # B*NQ is tiny (512 int8 = 512 B) -> single block, no grid, no tiling; per-grid-step
    # overhead would dominate.  Even at NQ ~ 1e6 a full (1, B*NQ) int8 row fits any
    # generation's VMEM, so full-row blocks remain the right choice when scaling.
    flat = pl.pallas_call(
        kernel,
        out_shape=jax.ShapeDtypeStruct((1, bs * num_queries), jnp.int8),
        in_specs=[pl.BlockSpec(memory_space=pltpu.MemorySpace.SMEM)],
        out_specs=pl.BlockSpec(memory_space=pltpu.MemorySpace.VMEM),
    )(bounds_flat)
    return flat.reshape(bs, num_queries)


def _box_to_bounds(box, len_feature: int):
    """Host float64 scalar math, identical to the PyTorch module (.item() path)."""
    cx, cy, w, h = [float(v) for v in np.asarray(box, dtype=np.float64).reshape(4)]
    xmin, ymin = cx - w / 2.0, cy - h / 2.0
    xmax, ymax = cx + w / 2.0, cy + h / 2.0
    Xmin = int(np.ceil(xmin * len_feature))
    Ymin = int(np.ceil(ymin * len_feature))
    Xmax = int(np.ceil(xmax * len_feature))
    Ymax = int(np.ceil(ymax * len_feature))
    if Xmin == Xmax:
        Xmax += 1
    if Ymin == Ymax:
        Ymax += 1
    return Xmin, Ymin, Xmax, Ymax


def tracking_matcher(outputs: dict, targets: list):
    """Mirrors TrackingMatcher.forward: returns [(index_i, index_j)] per batch element.

    The variable-length index tuples cannot have static shapes, so the dense-mask ->
    index-list conversion happens on host (exactly what the torch module returns).
    On-device consumers should call tracking_matcher_mask directly and skip this sync.
    """
    bs, num_queries = outputs["pred_logits"].shape[:2]
    len_feature = int(np.sqrt(num_queries))

    # Host float64 bounds math (bit-exact with the PyTorch .item() / np.ceil path).
    bounds = np.asarray(
        [_box_to_bounds(t["boxes"][0], len_feature) for t in targets], dtype=np.int32
    ).reshape(-1)                                                        # (4*B,)
    mask = np.asarray(
        jax.block_until_ready(tracking_matcher_mask(jnp.asarray(bounds), num_queries))
    )

    indices = []
    for i in range(bs):
        c = np.flatnonzero(mask[i]).astype(np.int64)    # selected prediction indices
        d = np.zeros(len(c), dtype=np.int64)            # target index is always 0
        indices.append((c, d))
    return indices


def _reference_matcher(outputs, targets):
    """Pure-numpy transcription of the PyTorch module (float64 scalar math)."""
    indices = []
    bs, num_queries = outputs["pred_logits"].shape[:2]
    for i in range(bs):
        cx, cy, w, h = [float(v) for v in np.asarray(targets[i]["boxes"][0])]
        xmin, ymin = cx - w / 2, cy - h / 2
        xmax, ymax = cx + w / 2, cy + h / 2
        len_feature = int(np.sqrt(num_queries))
        Xmin = int(np.ceil(xmin * len_feature))
        Ymin = int(np.ceil(ymin * len_feature))
        Xmax = int(np.ceil(xmax * len_feature))
        Ymax = int(np.ceil(ymax * len_feature))
        if Xmin == Xmax:
            Xmax += 1
        if Ymin == Ymax:
            Ymax += 1
        b = np.arange(0, num_queries, 1).reshape([len_feature, len_feature])
        c = b[Ymin:Ymax, Xmin:Xmax].flatten()
        d = np.zeros(len(c), dtype=np.int64)
        indices.append((c.astype(np.int64), d))
    return indices


if __name__ == "__main__":
    key = jax.random.PRNGKey(0)
    bs, num_queries, num_classes = 2, 256, 2            # L = 16 feature grid

    k1, k2, k3, k4 = jax.random.split(key, 4)
    pred_logits = jax.random.normal(k1, (bs, num_queries, num_classes), jnp.float32)
    pred_boxes = jax.random.uniform(k2, (bs, num_queries, 4), jnp.float32)

    # Deterministic targets: boxes comfortably inside [0, 1].
    centers = jax.random.uniform(k3, (bs, 2), jnp.float32, minval=0.3, maxval=0.7)
    sizes = jax.random.uniform(k4, (bs, 2), jnp.float32, minval=0.1, maxval=0.3)
    target_boxes = jnp.concatenate([centers, sizes], axis=-1)            # (B, 4)

    outputs = {"pred_logits": pred_logits, "pred_boxes": pred_boxes}
    targets = [{"labels": jnp.array([0]), "boxes": target_boxes[i:i + 1]} for i in range(bs)]

    got = tracking_matcher(outputs, targets)
    ref = _reference_matcher(outputs, targets)

    for (gi, gj), (ri, rj) in zip(got, ref):
        assert gi.dtype == np.int64 and gj.dtype == np.int64
        np.testing.assert_array_equal(gi, ri)
        np.testing.assert_array_equal(gj, rj)

    print("KERNEL_OK")
</pallas_src>

<mosaic_0001>
module attributes {stable_mosaic.version = 11 : i64} {
  func.func @_matcher_kernel(%arg0: memref<8xi32, #tpu.memory_space<smem>>, %arg1: memref<1x512xi8, #tpu.memory_space<vmem>>) attributes {dimension_semantics = [], scalar_prefetch = 0 : i64, scratch_operands = 0 : i64, tpu.core_type = #tpu.core_type<tc>} {
    %0 = tpu.iota {dimensions = array<i32: 1>} : vector<1x256xi32>
    %c4_i32 = arith.constant 4 : i32
    %1 = vector.broadcast %c4_i32 : i32 to vector<1x256xi32>
    %2 = arith.shrsi %0, %1 : vector<1x256xi32>
    %c15_i32 = arith.constant 15 : i32
    %3 = vector.broadcast %c15_i32 : i32 to vector<1x256xi32>
    %4 = arith.andi %0, %3 : vector<1x256xi32>
    %c0 = arith.constant 0 : index
    %5 = memref.load %arg0[%c0] : memref<8xi32, #tpu.memory_space<smem>>
    %c1 = arith.constant 1 : index
    %6 = memref.load %arg0[%c1] : memref<8xi32, #tpu.memory_space<smem>>
    %c2 = arith.constant 2 : index
    %7 = memref.load %arg0[%c2] : memref<8xi32, #tpu.memory_space<smem>>
    %c3 = arith.constant 3 : index
    %8 = memref.load %arg0[%c3] : memref<8xi32, #tpu.memory_space<smem>>
    %9 = vector.broadcast %6 : i32 to vector<1x256xi32>
    %10 = arith.cmpi sge, %2, %9 : vector<1x256xi32>
    %11 = vector.broadcast %8 : i32 to vector<1x256xi32>
    %12 = arith.cmpi slt, %2, %11 : vector<1x256xi32>
    %13 = arith.andi %10, %12 : vector<1x256xi1>
    %14 = vector.broadcast %5 : i32 to vector<1x256xi32>
    %15 = arith.cmpi sge, %4, %14 : vector<1x256xi32>
    %16 = arith.andi %13, %15 : vector<1x256xi1>
    %17 = vector.broadcast %7 : i32 to vector<1x256xi32>
    %18 = arith.cmpi slt, %4, %17 : vector<1x256xi32>
    %19 = arith.andi %16, %18 : vector<1x256xi1>
    %20 = arith.extui %19 : vector<1x256xi1> to vector<1x256xi8>
    %c0_0 = arith.constant 0 : index
    %c0_1 = arith.constant 0 : index
    %21 = vector.load %arg1[%c0_0, %c0_1] : memref<1x512xi8, #tpu.memory_space<vmem>>, vector<1x256xi8>
    tpu.vector_store %arg1[%c0_0, %c0_1], %20 {strides = array<i32>} : memref<1x512xi8, #tpu.memory_space<vmem>>, vector<1x256xi8>,
    %c4 = arith.constant 4 : index
    %22 = memref.load %arg0[%c4] : memref<8xi32, #tpu.memory_space<smem>>
    %c5 = arith.constant 5 : index
    %23 = memref.load %arg0[%c5] : memref<8xi32, #tpu.memory_space<smem>>
    %c6 = arith.constant 6 : index
    %24 = memref.load %arg0[%c6] : memref<8xi32, #tpu.memory_space<smem>>
    %c7 = arith.constant 7 : index
    %25 = memref.load %arg0[%c7] : memref<8xi32, #tpu.memory_space<smem>>
    %26 = vector.broadcast %23 : i32 to vector<1x256xi32>
    %27 = arith.cmpi sge, %2, %26 : vector<1x256xi32>
    %28 = vector.broadcast %25 : i32 to vector<1x256xi32>
    %29 = arith.cmpi slt, %2, %28 : vector<1x256xi32>
    %30 = arith.andi %27, %29 : vector<1x256xi1>
    %31 = vector.broadcast %22 : i32 to vector<1x256xi32>
    %32 = arith.cmpi sge, %4, %31 : vector<1x256xi32>
    %33 = arith.andi %30, %32 : vector<1x256xi1>
    %34 = vector.broadcast %24 : i32 to vector<1x256xi32>
    %35 = arith.cmpi slt, %4, %34 : vector<1x256xi32>
    %36 = arith.andi %33, %35 : vector<1x256xi1>
    %37 = arith.extui %36 : vector<1x256xi1> to vector<1x256xi8>
    %c0_2 = arith.constant 0 : index
    %c256 = arith.constant 256 : index
    %38 = vector.load %arg1[%c0_2, %c256] : memref<1x512xi8, #tpu.memory_space<vmem>>, vector<1x256xi8>
    tpu.vector_store %arg1[%c0_2, %c256], %37 {strides = array<i32>} : memref<1x512xi8, #tpu.memory_space<vmem>>, vector<1x256xi8>,
    return
  }
}

</mosaic_0001>

<llo_original>
// kernel: tracking_matcher_mask.1
$region0: #{tracking_matcher_mask.1}
  #allocation0 [shape = 'u32[]', space=smem, size = 0x4, offset = 0x4, fixed_abs, tag = 'smem constant byte address 0x4 - core index']
  #allocation1 [shape = 'u32[144,128]{1,0:T(1,128)}', space=vmem, size = 0x12000, scoped, tag = 'internal scratch']
  %s0 = inlined_call_operand.hbm [shape: s32[8], index: 0, kind: input, shape index: {}]
  %s1 = inlined_call_operand.vmem [shape: s8[1,512], index: 1, kind: output, shape index: {}]
  %s2 = sld [smem:[#allocation0]]
  $region18: #{tracking_matcher_mask.1} parent=0
    _
  %s4 = ssub.s32 1, %s2
  %s5 = scalar_select 0, %s4, %s2
  $region1: #{tracking_matcher_mask.1} parent=0
    #allocation2 [shape = 'u8[512]{0}', space=smem, size = 0x200, scoped, tag = 'input window, operand 0, single buffered']
    #allocation3 [shape = 's32[1]{0}', space=sflag, size = 0x4, scoped, tag = 'scoped memory for tracking_matcher_mask.1']
    %6 = vsyncpa [#allocation3], 0
    // Predicated region
    $region2: #{tracking_matcher_mask.1} parent=1 // pred_check
      _
    $region3: #{tracking_matcher_mask.1} parent=1 // pred_check_branch
      %8 = sbr.rel (0) target = $region5
    $region4: #{tracking_matcher_mask.1} parent=1 // pred_region
      %s10 = ssub.s32 16, 16
      %11 = vsyncadd [#allocation3], %s10
      %14 = dma.hbm_to_smem %s0, 16, [#allocation2], [#allocation3]
    $region5: #{tracking_matcher_mask.1} parent=1 // pred_fallthru
      _
    // Predicated region
    $region6: #{tracking_matcher_mask.1} parent=1 // pred_check
      _
    $region7: #{tracking_matcher_mask.1} parent=1 // pred_check_branch
      %16 = sbr.rel (0) target = $region9
    $region8: #{tracking_matcher_mask.1} parent=1 // pred_region
      %17 = dma.done [#allocation3], 16
    $region9: #{tracking_matcher_mask.1} parent=1 // pred_fallthru
      _
    %18 = sfence
    %v21 = vlaneseq
    %v22 = vand.u32 %v21, 127
    %v23 = vadd.s32 %v22, 128
    %v24 = vshra.s32 %v22, 4
    %v25 = vshra.s32 %v23, 4
    %v26 = vand.u32 %v22, 15
    %v27 = vand.u32 %v23, 15
    %s28 = sld [smem:[#allocation2]]
    %s29 = sld [smem:[#allocation2 + $0x1]]
    %s30 = sld [smem:[#allocation2 + $0x2]]
    %s31 = sld [smem:[#allocation2 + $0x3]]
    %v32 = vstv %s29
    %vm33 = vcmp.ge.s32.totalorder %v24, %v32
    %vm34 = vcmp.ge.s32.totalorder %v25, %v32
    %v35 = vstv %s31
    %vm36 = vcmp.lt.s32.totalorder %v24, %v35
    %vm37 = vcmp.lt.s32.totalorder %v25, %v35
    %vm38 = vmand %vm33, %vm36
    %vm39 = vmand %vm34, %vm37
    %v40 = vstv %s28
    %vm41 = vcmp.ge.s32.totalorder %v26, %v40
    %vm42 = vcmp.ge.s32.totalorder %v27, %v40
    %vm43 = vmand %vm38, %vm41
    %vm44 = vmand %vm39, %vm42
    %v45 = vstv %s30
    %vm46 = vcmp.lt.s32.totalorder %v26, %v45
    %vm47 = vcmp.lt.s32.totalorder %v27, %v45
    %vm48 = vmand %vm43, %vm46
    %vm49 = vmand %vm44, %vm47
    %vm50 = vmpackc.low %vm49, %vm48
    %vm51 = vmpackc.even %vm50, %vm50
    %v52 = vsel %vm51, 16843009, 0
    %v53 = vlaneseq
    %v54 = vshrl.u32 %v53, 7
    %v55 = vsub.s32 0, %v54
    %v56 = vrot.slane %v52, %v55
    %v57 = vlaneseq
    %v58 = vshrl.u32 %v57, 7
    %v59 = vsub.s32 2, %v58
    %v60 = vrot.slane %v52, %v59
    %vm61 = vnez %v56
    %vm62 = vnez %v60
    %v63 = vsel %vm61, 16843009, 0
    %v64 = vsel %vm62, 16843009, 0
    %v65 = vcombine.low %v63, %v64
    %v67 = vunpack.c.l.s4 1966171168
    %v68 = vunpack.c.0.s8 %v67
    %v69 = vlaneseq
    %v70 = vshrl.u32 %v69, 7
    %v71 = vsub.s32 %v68, %v70
    %v72 = vrot.slane %v65, %v71
    %v74 = vunpack.c.l.s4 1966171168
    %v75 = vunpack.c.0.s8 %v74
    %v76 = vlaneseq
    %v77 = vshrl.u32 %v76, 7
    %v78 = vsub.s32 %v75, %v77
    %v79 = vrot.slane %v72, %v78
    %vm80 = vcmask 1040384
    %vm81 = vsmask.f32 0
    %vm82 = vmand %vm80, %vm81
    %vm83 = vcmask 1041409
    %vm84 = vsmask.f32 1024
    %vm85 = vmand %vm83, %vm84
    %vm86 = vmor %vm85, %vm82
    %v87 = vld [vmem:[%s1] sm:$0x3]
    %v88 = vsel %vm86, %v79, %v87
    %89 = vst [vmem:[%s1] sm:$0x3] %v88
    %s90 = sld [smem:[#allocation2 + $0x4]]
    %s91 = sld [smem:[#allocation2 + $0x5]]
    %s92 = sld [smem:[#allocation2 + $0x6]]
    %s93 = sld [smem:[#allocation2 + $0x7]]
    %v94 = vstv %s91
    %vm95 = vcmp.ge.s32.totalorder %v24, %v94
    %vm96 = vcmp.ge.s32.totalorder %v25, %v94
    %v97 = vstv %s93
    %vm98 = vcmp.lt.s32.totalorder %v24, %v97
    %vm99 = vcmp.lt.s32.totalorder %v25, %v97
    %vm100 = vmand %vm95, %vm98
    %vm101 = vmand %vm96, %vm99
    %v102 = vstv %s90
    %vm103 = vcmp.ge.s32.totalorder %v26, %v102
    %vm104 = vcmp.ge.s32.totalorder %v27, %v102
    %vm105 = vmand %vm100, %vm103
    %vm106 = vmand %vm101, %vm104
    %v107 = vstv %s92
    %vm108 = vcmp.lt.s32.totalorder %v26, %v107
    %vm109 = vcmp.lt.s32.totalorder %v27, %v107
    %vm110 = vmand %vm105, %vm108
    %vm111 = vmand %vm106, %vm109
    %vm112 = vmpackc.low %vm111, %vm110
    %vm113 = vmpackc.even %vm112, %vm112
    %v114 = vsel %vm113, 16843009, 0
    %v115 = vlaneseq
    %v116 = vshrl.u32 %v115, 7
    %v117 = vsub.s32 0, %v116
    %v118 = vrot.slane %v114, %v117
    %v119 = vlaneseq
    %v120 = vshrl.u32 %v119, 7
    %v121 = vsub.s32 2, %v120
    %v122 = vrot.slane %v114, %v121
    %vm123 = vnez %v118
    %vm124 = vnez %v122
    %v125 = vsel %vm123, 16843009, 0
    %v126 = vsel %vm124, 16843009, 0
    %v127 = vcombine.low %v125, %v126
    %v129 = vunpack.c.l.s4 1966171168
    %v130 = vunpack.c.0.s8 %v129
    %v131 = vlaneseq
    %v132 = vshrl.u32 %v131, 7
    %v133 = vsub.s32 %v130, %v132
    %v134 = vrot.slane %v127, %v133
    %v136 = vunpack.c.l.s4 1966171168
    %v137 = vunpack.c.0.s8 %v136
    %v138 = vlaneseq
    %v139 = vshrl.u32 %v138, 7
    %v140 = vsub.s32 %v137, %v139
    %v141 = vrot.slane %v134, %v140
    %v142 = vld [vmem:[%s1 + $0x2] sm:$0x3]
    %v143 = vsel %vm86, %v141, %v142
    %144 = vst [vmem:[%s1 + $0x2] sm:$0x3] %v143
    // Predicated region
    $region10: #{tracking_matcher_mask.1} parent=1 // pred_check
      _
    $region11: #{tracking_matcher_mask.1} parent=1 // pred_check_branch
      %146 = sbr.rel (0) target = $region13
    $region12: #{tracking_matcher_mask.1} parent=1 // pred_region
      _
    $region13: #{tracking_matcher_mask.1} parent=1 // pred_fallthru
      _
    // Predicated region
    $region14: #{tracking_matcher_mask.1} parent=1 // pred_check
      _
    $region15: #{tracking_matcher_mask.1} parent=1 // pred_check_branch
      %148 = sbr.rel (0) target = $region17
    $region16: #{tracking_matcher_mask.1} parent=1 // pred_region
      _
    $region17: #{tracking_matcher_mask.1} parent=1 // pred_fallthru
      _
    %149 = vsyncpa [#allocation3], 1

</llo_original>
